<compile_context>
chip_gen: v6e
topology: v6e:2x2x1
jax: 0.10.0
libtpu: 0.0.40
codegen_flags: <defaults>
</compile_context>

<pallas_src>
import functools

import jax
import jax.numpy as jnp
import numpy as np
from jax.experimental import pallas as pl
from jax.experimental.pallas import tpu as pltpu

KERNEL_SIZE = 5
PAD = 2            # padding='same' for kernel_size=5, stride=1
LN_EPS = 1e-5      # torch.nn.LayerNorm default eps


def _duration_predictor_kernel(x_ref, cw_ref, cb_ref, g_ref, bt_ref,
                               ow_ref, ob_ref, out_ref, *, n_blocks):
    """Per-batch-element kernel, (L, F) layout (F on the lane axis).

    x_ref : (L, F)              input features for this batch element
    cw_ref: (NB, 5F, F)         fused conv weights, cw[b, k*F+i, o] == torch W[o, i, k]
    cb_ref: (NB, 1, F)          conv biases
    g_ref : (NB, L, F)          LayerNorm((F, L)) gamma per block (transposed)
    bt_ref: (NB, L, F)          LayerNorm((F, L)) beta per block (transposed)
    ow_ref: (1, F)              output Linear weight (torch shape (1, F))
    ob_ref: (1, 1)              output Linear bias
    out_ref: (L, 1)             log-durations for this batch element
    """
    L, F = x_ref.shape
    x = x_ref[...].astype(jnp.float32)

    # Sublane-index map + boundary masks for the 'same' conv, hoisted out of
    # the block loop (constant across blocks).
    row = jax.lax.broadcasted_iota(jnp.int32, (L, F), 0)
    tap_masks = {}
    for k in range(KERNEL_SIZE):
        s = PAD - k
        if s > 0:
            tap_masks[k] = row >= s          # rows l < s wrapped -> zero
        elif s < 0:
            tap_masks[k] = row < (L + s)     # rows l >= L+s wrapped -> zero

    inv_n = 1.0 / float(L * F)
    ow = ow_ref[...].astype(jnp.float32)     # (1, F)
    ob = ob_ref[...].astype(jnp.float32)     # (1, 1)

    for blk in range(n_blocks):
        # ---- Conv1d(F, F, kernel_size=5, padding='same') ----
        # Build 5 shifted copies of x along L via XLU rolls + VPU masks
        # (no unaligned pad/slice copies), stack along lanes -> (L, 5F),
        # then a single fused MXU matmul over K = 5F with the bias folded
        # into the epilogue.
        taps = []
        for k in range(KERNEL_SIZE):
            s = PAD - k                      # tap_k[l] = x[l + k - PAD]
            if s == 0:
                taps.append(x)
            elif s > 0:
                shifted = pltpu.roll(x, shift=s, axis=0)
                taps.append(jnp.where(tap_masks[k], shifted, 0.0))
            else:
                shifted = pltpu.roll(x, shift=L + s, axis=0)
                taps.append(jnp.where(tap_masks[k], shifted, 0.0))
        x_cat = jnp.concatenate(taps, axis=1)                     # (L, 5F)

        y = jnp.dot(x_cat, cw_ref[blk],
                    preferred_element_type=jnp.float32) + cb_ref[blk]

        # ---- ReLU ----
        y = jnp.maximum(y, 0.0)

        # ---- LayerNorm over the (F, L) dims, per sample; single-pass ----
        s1 = jnp.sum(y, keepdims=True)                            # (1, 1)
        s2 = jnp.sum(y * y, keepdims=True)                        # (1, 1)
        mean = s1 * inv_n
        var = jnp.maximum(s2 * inv_n - mean * mean, 0.0)
        y = (y - mean) * jax.lax.rsqrt(var + LN_EPS)
        y = y * g_ref[blk] + bt_ref[blk]

        # TODO(synk): Dropout1d omitted (eval / inference semantics -> identity).

        # ---- residual ----
        x = y + x

    # ---- output Linear(F, 1): VPU multiply + lane reduce -> (L, 1) ----
    res = jnp.sum(x * ow, axis=1, keepdims=True) + ob
    out_ref[...] = res.astype(out_ref.dtype)


def duration_predictor(encoder_output, conv_w, conv_b, ln_g, ln_b, out_w, out_b):
    """encoder_output: (B, L, F) -> returns (B, L, 1).

    Parameters are given in torch layouts:
      conv_w: (NB, F, F, 5)   [out_ch, in_ch, tap]
      conv_b: (NB, F)
      ln_g, ln_b: (NB, F, L)  [LayerNorm((F, L)) weight/bias]
      out_w: (1, F)
      out_b: (1,)
    """
    B, L, F = encoder_output.shape
    NB = conv_w.shape[0]
    K5F = KERNEL_SIZE * F

    # One-time parameter re-layout for the (L, F) kernel layout.  (In a real
    # deployment these would be pre-packed once at load time.)
    cw = jnp.transpose(conv_w, (0, 3, 2, 1)).reshape(NB, K5F, F)   # (NB, 5F, F)
    cb = conv_b.reshape(NB, 1, F)
    g = jnp.transpose(ln_g, (0, 2, 1))                              # (NB, L, F)
    bt = jnp.transpose(ln_b, (0, 2, 1))
    ob = out_b.reshape(1, 1)

    kernel = functools.partial(_duration_predictor_kernel, n_blocks=NB)

    # Explicit VMEM budget: double-buffered blocks + headroom, clamped so it
    # is valid on every generation (v7x physical VMEM is 64 MiB).
    block_bytes = 4 * (L * F + NB * K5F * F + NB * F
                       + 2 * NB * L * F + F + 1 + L)
    vmem_limit = int(min(64 * 1024 * 1024,
                         max(16 * 1024 * 1024, 4 * block_bytes)))

    out = pl.pallas_call(
        kernel,
        out_shape=jax.ShapeDtypeStruct((B, L, 1), jnp.float32),
        grid_spec=pltpu.PrefetchScalarGridSpec(
            num_scalar_prefetch=0,
            grid=(B,),
            in_specs=[
                pl.BlockSpec((None, L, F), lambda b: (b, 0, 0)),     # x (B,L,F)
                pl.BlockSpec((NB, K5F, F), lambda b: (0, 0, 0)),     # conv_w
                pl.BlockSpec((NB, 1, F), lambda b: (0, 0, 0)),       # conv_b
                pl.BlockSpec((NB, L, F), lambda b: (0, 0, 0)),       # ln gamma
                pl.BlockSpec((NB, L, F), lambda b: (0, 0, 0)),       # ln beta
                pl.BlockSpec((1, F), lambda b: (0, 0)),              # out_w
                pl.BlockSpec((1, 1), lambda b: (0, 0)),              # out_b
            ],
            out_specs=pl.BlockSpec((None, L, 1), lambda b: (b, 0, 0)),
        ),
        compiler_params=pltpu.CompilerParams(
            dimension_semantics=("parallel",),
            vmem_limit_bytes=vmem_limit),
    )(encoder_output, cw, cb, g, bt, out_w, ob)

    return out                                                       # (B, L, 1)


def _reference(encoder_output, conv_w, conv_b, ln_g, ln_b, out_w, out_b):
    """Pure-JAX reference matching the PyTorch forward (torch layouts)."""
    B, L, F = encoder_output.shape
    NB = conv_w.shape[0]
    x = jnp.transpose(encoder_output, (0, 2, 1))                 # (B, F, L)
    for blk in range(NB):
        xp = jnp.pad(x, ((0, 0), (0, 0), (PAD, PAD)))
        y = jnp.zeros_like(x) + conv_b[blk][None, :, None]       # (B, F, L)
        for k in range(KERNEL_SIZE):
            y = y + jnp.einsum('oi,bil->bol', conv_w[blk, :, :, k],
                               xp[:, :, k:k + L])
        y = jnp.maximum(y, 0.0)
        mean = jnp.mean(y, axis=(1, 2), keepdims=True)
        var = jnp.mean((y - mean) ** 2, axis=(1, 2), keepdims=True)
        y = (y - mean) / jnp.sqrt(var + LN_EPS)
        y = y * ln_g[blk][None] + ln_b[blk][None]
        x = y + x
    out = jnp.einsum('bfl,of->blo', x, out_w) + out_b[None, None, :]
    return out                                                    # (B, L, 1)


if __name__ == "__main__":
    B, L, F = 2, 16, 8          # batch, input_length, input_features
    NB = 2                      # n_conv_blocks
    key = jax.random.PRNGKey(0)
    ks = jax.random.split(key, 8)

    encoder_output = jax.random.normal(ks[0], (B, L, F), jnp.float32)

    # Deterministic synthetic parameters (torch module shapes).
    conv_w = 0.2 * jax.random.normal(ks[1], (NB, F, F, KERNEL_SIZE), jnp.float32)
    conv_b = 0.1 * jax.random.normal(ks[2], (NB, F), jnp.float32)
    ln_g = 1.0 + 0.1 * jax.random.normal(ks[3], (NB, F, L), jnp.float32)
    ln_b = 0.1 * jax.random.normal(ks[4], (NB, F, L), jnp.float32)
    out_w = 0.3 * jax.random.normal(ks[5], (1, F), jnp.float32)   # torch Linear(F, 1)
    out_b = 0.1 * jax.random.normal(ks[6], (1,), jnp.float32)

    out = duration_predictor(encoder_output, conv_w, conv_b, ln_g, ln_b,
                             out_w, out_b)
    out = jax.block_until_ready(out)

    ref = _reference(encoder_output, conv_w, conv_b, ln_g, ln_b, out_w, out_b)
    np.testing.assert_allclose(np.asarray(out), np.asarray(ref),
                               rtol=1e-4, atol=1e-4)
    assert out.shape == (B, L, 1)

    print("KERNEL_OK")
</pallas_src>

<mosaic_0001>
module attributes {stable_mosaic.version = 11 : i64} {
  func.func @_duration_predictor_kernel(%arg0: i32, %arg1: memref<1x16x8xf32, #tpu.memory_space<vmem>>, %arg2: memref<2x40x8xf32, #tpu.memory_space<vmem>>, %arg3: memref<2x1x8xf32, #tpu.memory_space<vmem>>, %arg4: memref<2x16x8xf32, #tpu.memory_space<vmem>>, %arg5: memref<2x16x8xf32, #tpu.memory_space<vmem>>, %arg6: memref<1x8xf32, #tpu.memory_space<vmem>>, %arg7: memref<1x1xf32, #tpu.memory_space<vmem>>, %arg8: memref<1x16x1xf32, #tpu.memory_space<vmem>>) attributes {dimension_semantics = [#tpu.dimension_semantics<parallel>], iteration_bounds = array<i64: 2>, scalar_prefetch = 0 : i64, scratch_operands = 0 : i64, tpu.core_type = #tpu.core_type<tc>, window_params = [{transform_indices = @transform_0, window_bounds = array<i64: 1, 16, 8>}, {pipeline_mode = #tpu.pipeline_mode<synchronous>, transform_indices = @transform_1, window_bounds = array<i64: 2, 40, 8>}, {pipeline_mode = #tpu.pipeline_mode<synchronous>, transform_indices = @transform_2, window_bounds = array<i64: 2, 1, 8>}, {pipeline_mode = #tpu.pipeline_mode<synchronous>, transform_indices = @transform_3, window_bounds = array<i64: 2, 16, 8>}, {pipeline_mode = #tpu.pipeline_mode<synchronous>, transform_indices = @transform_4, window_bounds = array<i64: 2, 16, 8>}, {pipeline_mode = #tpu.pipeline_mode<synchronous>, transform_indices = @transform_5, window_bounds = array<i64: 1, 8>}, {pipeline_mode = #tpu.pipeline_mode<synchronous>, transform_indices = @transform_6, window_bounds = array<i64: 1, 1>}, {transform_indices = @transform_7, window_bounds = array<i64: 1, 16, 1>}]} {
    %c0 = arith.constant 0 : index
    %c0_0 = arith.constant 0 : index
    %c0_1 = arith.constant 0 : index
    %0 = vector.load %arg1[%c0, %c0_0, %c0_1] : memref<1x16x8xf32, #tpu.memory_space<vmem>>, vector<1x16x8xf32>
    %1 = vector.shape_cast %0 : vector<1x16x8xf32> to vector<16x8xf32>
    %2 = tpu.iota {dimensions = array<i32: 0>} : vector<16x8xi32>
    %c2_i32 = arith.constant 2 : i32
    %3 = vector.broadcast %c2_i32 : i32 to vector<16x8xi32>
    %4 = arith.cmpi sge, %2, %3 : vector<16x8xi32>
    %c1_i32 = arith.constant 1 : i32
    %5 = vector.broadcast %c1_i32 : i32 to vector<16x8xi32>
    %6 = arith.cmpi sge, %2, %5 : vector<16x8xi32>
    %c15_i32 = arith.constant 15 : i32
    %7 = vector.broadcast %c15_i32 : i32 to vector<16x8xi32>
    %8 = arith.cmpi slt, %2, %7 : vector<16x8xi32>
    %c14_i32 = arith.constant 14 : i32
    %9 = vector.broadcast %c14_i32 : i32 to vector<16x8xi32>
    %10 = arith.cmpi slt, %2, %9 : vector<16x8xi32>
    %c0_2 = arith.constant 0 : index
    %c0_3 = arith.constant 0 : index
    %11 = vector.load %arg6[%c0_2, %c0_3] : memref<1x8xf32, #tpu.memory_space<vmem>>, vector<1x8xf32>
    %c0_4 = arith.constant 0 : index
    %c0_5 = arith.constant 0 : index
    %12 = vector.load %arg7[%c0_4, %c0_5] : memref<1x1xf32, #tpu.memory_space<vmem>>, vector<1x1xf32>
    %c2_i32_6 = arith.constant 2 : i32
    %13 = tpu.dynamic_rotate %1 by %c2_i32_6 dim 0 : vector<16x8xf32>, i32 -> vector<16x8xf32>
    %cst = arith.constant 0.000000e+00 : f32
    %14 = vector.broadcast %cst : f32 to vector<16x8xf32>
    %15 = arith.select %4, %13, %14 : vector<16x8xi1>, vector<16x8xf32>
    %c1_i32_7 = arith.constant 1 : i32
    %16 = tpu.dynamic_rotate %1 by %c1_i32_7 dim 0 : vector<16x8xf32>, i32 -> vector<16x8xf32>
    %cst_8 = arith.constant 0.000000e+00 : f32
    %17 = vector.broadcast %cst_8 : f32 to vector<16x8xf32>
    %18 = arith.select %6, %16, %17 : vector<16x8xi1>, vector<16x8xf32>
    %c15_i32_9 = arith.constant 15 : i32
    %19 = tpu.dynamic_rotate %1 by %c15_i32_9 dim 0 : vector<16x8xf32>, i32 -> vector<16x8xf32>
    %cst_10 = arith.constant 0.000000e+00 : f32
    %20 = vector.broadcast %cst_10 : f32 to vector<16x8xf32>
    %21 = arith.select %8, %19, %20 : vector<16x8xi1>, vector<16x8xf32>
    %c14_i32_11 = arith.constant 14 : i32
    %22 = tpu.dynamic_rotate %1 by %c14_i32_11 dim 0 : vector<16x8xf32>, i32 -> vector<16x8xf32>
    %cst_12 = arith.constant 0.000000e+00 : f32
    %23 = vector.broadcast %cst_12 : f32 to vector<16x8xf32>
    %24 = arith.select %10, %22, %23 : vector<16x8xi1>, vector<16x8xf32>
    %25 = tpu.concatenate %15, %18, %1, %21, %24 in 1 : vector<16x8xf32>, vector<16x8xf32>, vector<16x8xf32>, vector<16x8xf32>, vector<16x8xf32> -> vector<16x40xf32>
    %c0_13 = arith.constant 0 : index
    %c0_14 = arith.constant 0 : index
    %c0_15 = arith.constant 0 : index
    %26 = vector.load %arg2[%c0_13, %c0_14, %c0_15] : memref<2x40x8xf32, #tpu.memory_space<vmem>>, vector<1x40x8xf32>
    %27 = vector.shape_cast %26 : vector<1x40x8xf32> to vector<40x8xf32>
    %cst_16 = arith.constant dense<0.000000e+00> : vector<16x8xf32>
    %28 = tpu.matmul %25, %27, %cst_16 {dimension_numbers = #tpu.dot_dimension_numbers<[1], [0], [0], [1], [0, 0, 1, 1], [], []>} : vector<16x40xf32>, vector<40x8xf32>, vector<16x8xf32> -> vector<16x8xf32>
    %c0_17 = arith.constant 0 : index
    %c0_18 = arith.constant 0 : index
    %c0_19 = arith.constant 0 : index
    %29 = vector.load %arg3[%c0_17, %c0_18, %c0_19] : memref<2x1x8xf32, #tpu.memory_space<vmem>>, vector<1x1x8xf32>
    %30 = vector.shape_cast %29 : vector<1x1x8xf32> to vector<1x8xf32>
    %31 = vector.broadcast %30 : vector<1x8xf32> to vector<16x8xf32>
    %32 = arith.addf %28, %31 : vector<16x8xf32>
    %cst_20 = arith.constant 0.000000e+00 : f32
    %33 = vector.broadcast %cst_20 : f32 to vector<16x8xf32>
    %34 = arith.maximumf %32, %33 : vector<16x8xf32>
    %35 = vector.shape_cast %34 : vector<16x8xf32> to vector<1x16x8xf32>
    %cst_21 = arith.constant dense<0.000000e+00> : vector<1xf32>
    %36 = vector.multi_reduction <add>, %35, %cst_21 [1, 2] : vector<1x16x8xf32> to vector<1xf32>
    %37 = vector.shape_cast %36 : vector<1xf32> to vector<1x1x1xf32>
    %38 = vector.extract %37[0, 0, 0] : f32 from vector<1x1x1xf32>
    %39 = vector.broadcast %38 : f32 to vector<1x1xf32>
    %40 = arith.mulf %34, %34 : vector<16x8xf32>
    %41 = vector.shape_cast %40 : vector<16x8xf32> to vector<1x16x8xf32>
    %cst_22 = arith.constant dense<0.000000e+00> : vector<1xf32>
    %42 = vector.multi_reduction <add>, %41, %cst_22 [1, 2] : vector<1x16x8xf32> to vector<1xf32>
    %43 = vector.shape_cast %42 : vector<1xf32> to vector<1x1x1xf32>
    %44 = vector.extract %43[0, 0, 0] : f32 from vector<1x1x1xf32>
    %45 = vector.broadcast %44 : f32 to vector<1x1xf32>
    %cst_23 = arith.constant 7.812500e-03 : f32
    %46 = vector.broadcast %cst_23 : f32 to vector<1x1xf32>
    %47 = arith.mulf %39, %46 : vector<1x1xf32>
    %cst_24 = arith.constant 7.812500e-03 : f32
    %48 = vector.broadcast %cst_24 : f32 to vector<1x1xf32>
    %49 = arith.mulf %45, %48 : vector<1x1xf32>
    %50 = arith.mulf %47, %47 : vector<1x1xf32>
    %51 = arith.subf %49, %50 : vector<1x1xf32>
    %cst_25 = arith.constant 0.000000e+00 : f32
    %52 = vector.broadcast %cst_25 : f32 to vector<1x1xf32>
    %53 = arith.maximumf %51, %52 : vector<1x1xf32>
    %54 = vector.broadcast %47 : vector<1x1xf32> to vector<16x8xf32>
    %55 = arith.subf %34, %54 : vector<16x8xf32>
    %cst_26 = arith.constant 9.99999974E-6 : f32
    %56 = vector.broadcast %cst_26 : f32 to vector<1x1xf32>
    %57 = arith.addf %53, %56 : vector<1x1xf32>
    %58 = math.rsqrt %57 : vector<1x1xf32>
    %59 = vector.broadcast %58 : vector<1x1xf32> to vector<16x8xf32>
    %60 = arith.mulf %55, %59 : vector<16x8xf32>
    %c0_27 = arith.constant 0 : index
    %c0_28 = arith.constant 0 : index
    %c0_29 = arith.constant 0 : index
    %61 = vector.load %arg4[%c0_27, %c0_28, %c0_29] : memref<2x16x8xf32, #tpu.memory_space<vmem>>, vector<1x16x8xf32>
    %62 = vector.shape_cast %61 : vector<1x16x8xf32> to vector<16x8xf32>
    %63 = arith.mulf %60, %62 : vector<16x8xf32>
    %c0_30 = arith.constant 0 : index
    %c0_31 = arith.constant 0 : index
    %c0_32 = arith.constant 0 : index
    %64 = vector.load %arg5[%c0_30, %c0_31, %c0_32] : memref<2x16x8xf32, #tpu.memory_space<vmem>>, vector<1x16x8xf32>
    %65 = vector.shape_cast %64 : vector<1x16x8xf32> to vector<16x8xf32>
    %66 = arith.addf %63, %65 : vector<16x8xf32>
    %67 = arith.addf %66, %1 : vector<16x8xf32>
    %c2_i32_33 = arith.constant 2 : i32
    %68 = tpu.dynamic_rotate %67 by %c2_i32_33 dim 0 : vector<16x8xf32>, i32 -> vector<16x8xf32>
    %cst_34 = arith.constant 0.000000e+00 : f32
    %69 = vector.broadcast %cst_34 : f32 to vector<16x8xf32>
    %70 = arith.select %4, %68, %69 : vector<16x8xi1>, vector<16x8xf32>
    %c1_i32_35 = arith.constant 1 : i32
    %71 = tpu.dynamic_rotate %67 by %c1_i32_35 dim 0 : vector<16x8xf32>, i32 -> vector<16x8xf32>
    %cst_36 = arith.constant 0.000000e+00 : f32
    %72 = vector.broadcast %cst_36 : f32 to vector<16x8xf32>
    %73 = arith.select %6, %71, %72 : vector<16x8xi1>, vector<16x8xf32>
    %c15_i32_37 = arith.constant 15 : i32
    %74 = tpu.dynamic_rotate %67 by %c15_i32_37 dim 0 : vector<16x8xf32>, i32 -> vector<16x8xf32>
    %cst_38 = arith.constant 0.000000e+00 : f32
    %75 = vector.broadcast %cst_38 : f32 to vector<16x8xf32>
    %76 = arith.select %8, %74, %75 : vector<16x8xi1>, vector<16x8xf32>
    %c14_i32_39 = arith.constant 14 : i32
    %77 = tpu.dynamic_rotate %67 by %c14_i32_39 dim 0 : vector<16x8xf32>, i32 -> vector<16x8xf32>
    %cst_40 = arith.constant 0.000000e+00 : f32
    %78 = vector.broadcast %cst_40 : f32 to vector<16x8xf32>
    %79 = arith.select %10, %77, %78 : vector<16x8xi1>, vector<16x8xf32>
    %80 = tpu.concatenate %70, %73, %67, %76, %79 in 1 : vector<16x8xf32>, vector<16x8xf32>, vector<16x8xf32>, vector<16x8xf32>, vector<16x8xf32> -> vector<16x40xf32>
    %c1 = arith.constant 1 : index
    %c0_41 = arith.constant 0 : index
    %c0_42 = arith.constant 0 : index
    %81 = vector.load %arg2[%c1, %c0_41, %c0_42] : memref<2x40x8xf32, #tpu.memory_space<vmem>>, vector<1x40x8xf32>
    %82 = vector.shape_cast %81 : vector<1x40x8xf32> to vector<40x8xf32>
    %cst_43 = arith.constant dense<0.000000e+00> : vector<16x8xf32>
    %83 = tpu.matmul %80, %82, %cst_43 {dimension_numbers = #tpu.dot_dimension_numbers<[1], [0], [0], [1], [0, 0, 1, 1], [], []>} : vector<16x40xf32>, vector<40x8xf32>, vector<16x8xf32> -> vector<16x8xf32>
    %c1_44 = arith.constant 1 : index
    %c0_45 = arith.constant 0 : index
    %c0_46 = arith.constant 0 : index
    %84 = vector.load %arg3[%c1_44, %c0_45, %c0_46] : memref<2x1x8xf32, #tpu.memory_space<vmem>>, vector<1x1x8xf32>
    %85 = vector.shape_cast %84 : vector<1x1x8xf32> to vector<1x8xf32>
    %86 = vector.broadcast %85 : vector<1x8xf32> to vector<16x8xf32>
    %87 = arith.addf %83, %86 : vector<16x8xf32>
    %cst_47 = arith.constant 0.000000e+00 : f32
    %88 = vector.broadcast %cst_47 : f32 to vector<16x8xf32>
    %89 = arith.maximumf %87, %88 : vector<16x8xf32>
    %90 = vector.shape_cast %89 : vector<16x8xf32> to vector<1x16x8xf32>
    %cst_48 = arith.constant dense<0.000000e+00> : vector<1xf32>
    %91 = vector.multi_reduction <add>, %90, %cst_48 [1, 2] : vector<1x16x8xf32> to vector<1xf32>
    %92 = vector.shape_cast %91 : vector<1xf32> to vector<1x1x1xf32>
    %93 = vector.extract %92[0, 0, 0] : f32 from vector<1x1x1xf32>
    %94 = vector.broadcast %93 : f32 to vector<1x1xf32>
    %95 = arith.mulf %89, %89 : vector<16x8xf32>
    %96 = vector.shape_cast %95 : vector<16x8xf32> to vector<1x16x8xf32>
    %cst_49 = arith.constant dense<0.000000e+00> : vector<1xf32>
    %97 = vector.multi_reduction <add>, %96, %cst_49 [1, 2] : vector<1x16x8xf32> to vector<1xf32>
    %98 = vector.shape_cast %97 : vector<1xf32> to vector<1x1x1xf32>
    %99 = vector.extract %98[0, 0, 0] : f32 from vector<1x1x1xf32>
    %100 = vector.broadcast %99 : f32 to vector<1x1xf32>
    %cst_50 = arith.constant 7.812500e-03 : f32
    %101 = vector.broadcast %cst_50 : f32 to vector<1x1xf32>
    %102 = arith.mulf %94, %101 : vector<1x1xf32>
    %cst_51 = arith.constant 7.812500e-03 : f32
    %103 = vector.broadcast %cst_51 : f32 to vector<1x1xf32>
    %104 = arith.mulf %100, %103 : vector<1x1xf32>
    %105 = arith.mulf %102, %102 : vector<1x1xf32>
    %106 = arith.subf %104, %105 : vector<1x1xf32>
    %cst_52 = arith.constant 0.000000e+00 : f32
    %107 = vector.broadcast %cst_52 : f32 to vector<1x1xf32>
    %108 = arith.maximumf %106, %107 : vector<1x1xf32>
    %109 = vector.broadcast %102 : vector<1x1xf32> to vector<16x8xf32>
    %110 = arith.subf %89, %109 : vector<16x8xf32>
    %cst_53 = arith.constant 9.99999974E-6 : f32
    %111 = vector.broadcast %cst_53 : f32 to vector<1x1xf32>
    %112 = arith.addf %108, %111 : vector<1x1xf32>
    %113 = math.rsqrt %112 : vector<1x1xf32>
    %114 = vector.broadcast %113 : vector<1x1xf32> to vector<16x8xf32>
    %115 = arith.mulf %110, %114 : vector<16x8xf32>
    %c1_54 = arith.constant 1 : index
    %c0_55 = arith.constant 0 : index
    %c0_56 = arith.constant 0 : index
    %116 = vector.load %arg4[%c1_54, %c0_55, %c0_56] : memref<2x16x8xf32, #tpu.memory_space<vmem>>, vector<1x16x8xf32>
    %117 = vector.shape_cast %116 : vector<1x16x8xf32> to vector<16x8xf32>
    %118 = arith.mulf %115, %117 : vector<16x8xf32>
    %c1_57 = arith.constant 1 : index
    %c0_58 = arith.constant 0 : index
    %c0_59 = arith.constant 0 : index
    %119 = vector.load %arg5[%c1_57, %c0_58, %c0_59] : memref<2x16x8xf32, #tpu.memory_space<vmem>>, vector<1x16x8xf32>
    %120 = vector.shape_cast %119 : vector<1x16x8xf32> to vector<16x8xf32>
    %121 = arith.addf %118, %120 : vector<16x8xf32>
    %122 = arith.addf %121, %67 : vector<16x8xf32>
    %123 = vector.broadcast %11 : vector<1x8xf32> to vector<16x8xf32>
    %124 = arith.mulf %122, %123 : vector<16x8xf32>
    %cst_60 = arith.constant dense<0.000000e+00> : vector<16xf32>
    %125 = vector.multi_reduction <add>, %124, %cst_60 [1] : vector<16x8xf32> to vector<16xf32>
    %126 = vector.shape_cast %125 : vector<16xf32> to vector<16x1xf32>
    %127 = vector.broadcast %12 : vector<1x1xf32> to vector<16x1xf32>
    %128 = arith.addf %126, %127 : vector<16x1xf32>
    %c0_61 = arith.constant 0 : index
    %c0_62 = arith.constant 0 : index
    %c0_63 = arith.constant 0 : index
    %129 = vector.load %arg8[%c0_61, %c0_62, %c0_63] : memref<1x16x1xf32, #tpu.memory_space<vmem>>, vector<1x16x1xf32>
    %130 = vector.shape_cast %129 : vector<1x16x1xf32> to vector<16x1xf32>
    %131 = vector.shape_cast %128 : vector<16x1xf32> to vector<1x16x1xf32>
    tpu.vector_store %arg8[%c0_61, %c0_62, %c0_63], %131 {strides = array<i32>} : memref<1x16x1xf32, #tpu.memory_space<vmem>>, vector<1x16x1xf32>,
    return
  }
  func.func @transform_0(%arg0: i32) -> (i32, i32, i32) {
    %c0_i32 = arith.constant 0 : i32
    %c0_i32_0 = arith.constant 0 : i32
    %c0_i32_1 = arith.constant 0 : i32
    return %arg0, %c0_i32, %c0_i32_0 : i32, i32, i32
  }
  func.func @transform_1(%arg0: i32) -> (i32, i32, i32) {
    %c0_i32 = arith.constant 0 : i32
    %c0_i32_0 = arith.constant 0 : i32
    %c0_i32_1 = arith.constant 0 : i32
    %c0_i32_2 = arith.constant 0 : i32
    return %c0_i32, %c0_i32_0, %c0_i32_1 : i32, i32, i32
  }
  func.func @transform_2(%arg0: i32) -> (i32, i32, i32) {
    %c0_i32 = arith.constant 0 : i32
    %c0_i32_0 = arith.constant 0 : i32
    %c0_i32_1 = arith.constant 0 : i32
    %c0_i32_2 = arith.constant 0 : i32
    return %c0_i32, %c0_i32_0, %c0_i32_1 : i32, i32, i32
  }
  func.func @transform_3(%arg0: i32) -> (i32, i32, i32) {
    %c0_i32 = arith.constant 0 : i32
    %c0_i32_0 = arith.constant 0 : i32
    %c0_i32_1 = arith.constant 0 : i32
    %c0_i32_2 = arith.constant 0 : i32
    return %c0_i32, %c0_i32_0, %c0_i32_1 : i32, i32, i32
  }
  func.func @transform_4(%arg0: i32) -> (i32, i32, i32) {
    %c0_i32 = arith.constant 0 : i32
    %c0_i32_0 = arith.constant 0 : i32
    %c0_i32_1 = arith.constant 0 : i32
    %c0_i32_2 = arith.constant 0 : i32
    return %c0_i32, %c0_i32_0, %c0_i32_1 : i32, i32, i32
  }
  func.func @transform_5(%arg0: i32) -> (i32, i32) {
    %c0_i32 = arith.constant 0 : i32
    %c0_i32_0 = arith.constant 0 : i32
    %c0_i32_1 = arith.constant 0 : i32
    return %c0_i32, %c0_i32_0 : i32, i32
  }
  func.func @transform_6(%arg0: i32) -> (i32, i32) {
    %c0_i32 = arith.constant 0 : i32
    %c0_i32_0 = arith.constant 0 : i32
    %c0_i32_1 = arith.constant 0 : i32
    return %c0_i32, %c0_i32_0 : i32, i32
  }
  func.func @transform_7(%arg0: i32) -> (i32, i32, i32) {
    %c0_i32 = arith.constant 0 : i32
    %c0_i32_0 = arith.constant 0 : i32
    %c0_i32_1 = arith.constant 0 : i32
    return %arg0, %c0_i32, %c0_i32_0 : i32, i32, i32
  }
}

</mosaic_0001>

<llo_original>
// kernel: tpu_custom_call.1
$region0: #{tpu_custom_call.1}
  #allocation0 [shape = 'u32[]', space=smem, size = 0x4, offset = 0x4, fixed_abs, tag = 'smem constant byte address 0x4 - core index']
  #allocation1 [shape = 'u32[144,128]{1,0:T(1,128)}', space=vmem, size = 0x12000, scoped, tag = 'internal scratch']
  #allocation2 [shape = 'f32[1,1]{1,0:T(1,128)S(1)}', space=vmem, size = 0x200, scoped, tag = 'scoped memory for tpu_custom_call.1']
  %s0 = inlined_call_operand.vmem [shape: f32[2,16,8], index: 0, kind: input, shape index: {}]
  %s1 = inlined_call_operand.vmem [shape: f32[2,40,8], index: 1, kind: input, shape index: {}]
  %s2 = inlined_call_operand.vmem [shape: f32[2,1,8], index: 2, kind: input, shape index: {}]
  %s3 = inlined_call_operand.vmem [shape: f32[2,16,8], index: 3, kind: input, shape index: {}]
  %s4 = inlined_call_operand.vmem [shape: f32[2,16,8], index: 4, kind: input, shape index: {}]
  %s5 = inlined_call_operand.vmem [shape: f32[1,8], index: 5, kind: input, shape index: {}]
  %s6 = inlined_call_operand.<no memory space> [shape: f32[1,1], index: 6, kind: input, shape index: {}]
  %s7 = inlined_call_operand.vmem [shape: f32[2,16,1], index: 7, kind: output, shape index: {}]
  %s8 = sld [smem:[#allocation0]]
  $region61: #{tpu_custom_call.1} parent=0
    _
  %s10 = ssub.s32 1, %s8
  %s11 = scalar_select 0, %s10, %s8
  %v12 = vstv %s6
  %13 = vst [vmem:[#allocation2] sm:$0x1] %v12
  loop: start=0, step=1, limit=4
  $region2: #{tpu_custom_call.1} parent=0 // loop_pre_header
    _
  $region3: #{tpu_custom_call.1} parent=0 // loop_header
    %s15 = sphi 0, %s19
    %p16 = scmp.ge.s32.totalorder %s15, 4
    %s25 = sphi 0, %s27
    %s28 = sphi 0, %s25
    %s29 = sphi 0, %s28
    %s45 = sphi 0, %s29
    %s49 = sphi 0, %s49
    %s51 = sphi 0, %s49
    %s52 = sphi 0, %s51
    %s66 = sphi 0, %s52
    %s70 = sphi 0, %s70
    %s72 = sphi 0, %s70
    %s73 = sphi 0, %s72
    %s87 = sphi 0, %s73
    %s91 = sphi 0, %s91
    %s93 = sphi 0, %s91
    %s94 = sphi 0, %s93
    %s108 = sphi 0, %s94
    %s112 = sphi 0, %s112
    %s114 = sphi 0, %s112
    %s115 = sphi 0, %s114
    %s129 = sphi 0, %s115
    %s133 = sphi 0, %s133
    %s135 = sphi 0, %s133
    %s136 = sphi 0, %s135
    %s150 = sphi 0, %s136
    %s154 = sphi 0, %s154
    %s156 = sphi 0, %s154
    %s157 = sphi 0, %s156
    %s171 = sphi 0, %s157
    %s177 = sphi 0, %s179
    %s180 = sphi 0, %s177
    %s181 = sphi 0, %s180
    %s197 = sphi 0, %s181
  $region4: #{tpu_custom_call.1} parent=0 // loop_header_branch
    %18 = sbr.rel (%p16) target = $region8
  $region5: #{tpu_custom_call.1} parent=0 // loop_body
    %s20 = ssub.s32 %s15, 1
    %s21 = ssub.s32 %s15, 2
    %s22 = sadd.s32 %s15, 1
    %s23 = ssub.s32 %s15, %s22
    %p24 = scmp.eq.s32.totalorder %s23, 0
    %s26 = sadd.s32 %s25, 1
    %s27 = scalar_select %p24, %s25, %s26
    %p30 = pneg %p24
    %p31 = scmp.eq.s32.totalorder %s15, 1
    %p32 = por %p30, %p31
    %p33 = scmp.ne.s32.totalorder %s25, %s28
    %p34 = scmp.eq.s32.totalorder %s15, 0
    %p35 = por %p33, %p34
    %p36 = scmp.ne.s32.totalorder %s25, %s28
    %p37 = scmp.eq.s32.totalorder %s20, 1
    %p38 = por %p36, %p37
    %p39 = scmp.ne.s32.totalorder %s28, %s29
    %p40 = scmp.eq.s32.totalorder %s20, 0
    %p41 = por %p39, %p40
    %p42 = scmp.ne.s32.totalorder %s28, %s29
    %p43 = scmp.eq.s32.totalorder %s21, 1
    %p44 = por %p42, %p43
    %p46 = scmp.ne.s32.totalorder %s29, %s45
    %p47 = scmp.eq.s32.totalorder %s21, 0
    %p48 = por %p46, %p47
    %s50 = sadd.s32 %s49, 1
    %p53 = scmp.eq.s32.totalorder %s15, 1
    %p54 = scmp.ne.s32.totalorder %s49, %s51
    %p55 = scmp.eq.s32.totalorder %s15, 0
    %p56 = por %p54, %p55
    %p57 = scmp.ne.s32.totalorder %s49, %s51
    %p58 = scmp.eq.s32.totalorder %s20, 1
    %p59 = por %p57, %p58
    %p60 = scmp.ne.s32.totalorder %s51, %s52
    %p61 = scmp.eq.s32.totalorder %s20, 0
    %p62 = por %p60, %p61
    %p63 = scmp.ne.s32.totalorder %s51, %s52
    %p64 = scmp.eq.s32.totalorder %s21, 1
    %p65 = por %p63, %p64
    %p67 = scmp.ne.s32.totalorder %s52, %s66
    %p68 = scmp.eq.s32.totalorder %s21, 0
    %p69 = por %p67, %p68
    %s71 = sadd.s32 %s70, 1
    %p74 = scmp.eq.s32.totalorder %s15, 1
    %p75 = scmp.ne.s32.totalorder %s70, %s72
    %p76 = scmp.eq.s32.totalorder %s15, 0
    %p77 = por %p75, %p76
    %p78 = scmp.ne.s32.totalorder %s70, %s72
    %p79 = scmp.eq.s32.totalorder %s20, 1
    %p80 = por %p78, %p79
    %p81 = scmp.ne.s32.totalorder %s72, %s73
    %p82 = scmp.eq.s32.totalorder %s20, 0
    %p83 = por %p81, %p82
    %p84 = scmp.ne.s32.totalorder %s72, %s73
    %p85 = scmp.eq.s32.totalorder %s21, 1
    %p86 = por %p84, %p85
    %p88 = scmp.ne.s32.totalorder %s73, %s87
    %p89 = scmp.eq.s32.totalorder %s21, 0
    %p90 = por %p88, %p89
    %s92 = sadd.s32 %s91, 1
    %p95 = scmp.eq.s32.totalorder %s15, 1
    %p96 = scmp.ne.s32.totalorder %s91, %s93
    %p97 = scmp.eq.s32.totalorder %s15, 0
    %p98 = por %p96, %p97
    %p99 = scmp.ne.s32.totalorder %s91, %s93
    %p100 = scmp.eq.s32.totalorder %s20, 1
    %p101 = por %p99, %p100
    %p102 = scmp.ne.s32.totalorder %s93, %s94
    %p103 = scmp.eq.s32.totalorder %s20, 0
    %p104 = por %p102, %p103
    %p105 = scmp.ne.s32.totalorder %s93, %s94
    %p106 = scmp.eq.s32.totalorder %s21, 1
    %p107 = por %p105, %p106
    %p109 = scmp.ne.s32.totalorder %s94, %s108
    %p110 = scmp.eq.s32.totalorder %s21, 0
    %p111 = por %p109, %p110
    %s113 = sadd.s32 %s112, 1
    %p116 = scmp.eq.s32.totalorder %s15, 1
    %p117 = scmp.ne.s32.totalorder %s112, %s114
    %p118 = scmp.eq.s32.totalorder %s15, 0
    %p119 = por %p117, %p118
    %p120 = scmp.ne.s32.totalorder %s112, %s114
    %p121 = scmp.eq.s32.totalorder %s20, 1
    %p122 = por %p120, %p121
    %p123 = scmp.ne.s32.totalorder %s114, %s115
    %p124 = scmp.eq.s32.totalorder %s20, 0
    %p125 = por %p123, %p124
    %p126 = scmp.ne.s32.totalorder %s114, %s115
    %p127 = scmp.eq.s32.totalorder %s21, 1
    %p128 = por %p126, %p127
    %p130 = scmp.ne.s32.totalorder %s115, %s129
    %p131 = scmp.eq.s32.totalorder %s21, 0
    %p132 = por %p130, %p131
    %s134 = sadd.s32 %s133, 1
    %p137 = scmp.eq.s32.totalorder %s15, 1
    %p138 = scmp.ne.s32.totalorder %s133, %s135
    %p139 = scmp.eq.s32.totalorder %s15, 0
    %p140 = por %p138, %p139
    %p141 = scmp.ne.s32.totalorder %s133, %s135
    %p142 = scmp.eq.s32.totalorder %s20, 1
    %p143 = por %p141, %p142
    %p144 = scmp.ne.s32.totalorder %s135, %s136
    %p145 = scmp.eq.s32.totalorder %s20, 0
    %p146 = por %p144, %p145
    %p147 = scmp.ne.s32.totalorder %s135, %s136
    %p148 = scmp.eq.s32.totalorder %s21, 1
    %p149 = por %p147, %p148
    %p151 = scmp.ne.s32.totalorder %s136, %s150
    %p152 = scmp.eq.s32.totalorder %s21, 0
    %p153 = por %p151, %p152
    %s155 = sadd.s32 %s154, 1
    %p158 = scmp.eq.s32.totalorder %s15, 1
    %p159 = scmp.ne.s32.totalorder %s154, %s156
    %p160 = scmp.eq.s32.totalorder %s15, 0
    %p161 = por %p159, %p160
    %p162 = scmp.ne.s32.totalorder %s154, %s156
    %p163 = scmp.eq.s32.totalorder %s20, 1
    %p164 = por %p162, %p163
    %p165 = scmp.ne.s32.totalorder %s156, %s157
    %p166 = scmp.eq.s32.totalorder %s20, 0
    %p167 = por %p165, %p166
    %p168 = scmp.ne.s32.totalorder %s156, %s157
    %p169 = scmp.eq.s32.totalorder %s21, 1
    %p170 = por %p168, %p169
    %p172 = scmp.ne.s32.totalorder %s157, %s171
    %p173 = scmp.eq.s32.totalorder %s21, 0
    %p174 = por %p172, %p173
    %s175 = ssub.s32 %s15, %s22
    %p176 = scmp.eq.s32.totalorder %s175, 0
    %s178 = sadd.s32 %s177, 1
    %s179 = scalar_select %p176, %s177, %s178
    %p182 = pneg %p176
    %p183 = scmp.eq.s32.totalorder %s15, 1
    %p184 = por %p182, %p183
    %p185 = scmp.ne.s32.totalorder %s177, %s180
    %p186 = scmp.eq.s32.totalorder %s15, 0
    %p187 = por %p185, %p186
    %p188 = scmp.ne.s32.totalorder %s177, %s180
    %p189 = scmp.eq.s32.totalorder %s20, 1
    %p190 = por %p188, %p189
    %p191 = scmp.ne.s32.totalorder %s180, %s181
    %p192 = scmp.eq.s32.totalorder %s20, 0
    %p193 = por %p191, %p192
    %p194 = scmp.ne.s32.totalorder %s180, %s181
    %p195 = scmp.eq.s32.totalorder %s21, 1
    %p196 = por %p194, %p195
    %p198 = scmp.ne.s32.totalorder %s181, %s197
    %p199 = scmp.eq.s32.totalorder %s21, 0
    %p200 = por %p198, %p199
    %p201 = scmp.le.s32.totalorder 1, %s15
    %p202 = scmp.lt.s32.totalorder %s15, 3
    %p203 = pnand %p201, %p202
    %p204 = pneg %p203
    // Predicated region
    $region9: #{tpu_custom_call.1} parent=5 // pred_check
      _
    $region10: #{tpu_custom_call.1} parent=5 // pred_check_branch
      %206 = sbr.rel (%p203) target = $region12
    $region11: #{tpu_custom_call.1} parent=5 // pred_region
      %s207 = ssub.s32 %s15, 1
      // Predicated region
      $region13: #{tpu_custom_call.1} parent=11 // pred_check
        %p208 = pneg %p62
      $region14: #{tpu_custom_call.1} parent=11 // pred_check_branch
        %210 = sbr.rel (%p208) target = $region16
      $region15: #{tpu_custom_call.1} parent=11 // pred_region
        _
      $region16: #{tpu_custom_call.1} parent=11 // pred_fallthru
        _
      // Predicated region
      $region17: #{tpu_custom_call.1} parent=11 // pred_check
        %p211 = pneg %p83
      $region18: #{tpu_custom_call.1} parent=11 // pred_check_branch
        %213 = sbr.rel (%p211) target = $region20
      $region19: #{tpu_custom_call.1} parent=11 // pred_region
        _
      $region20: #{tpu_custom_call.1} parent=11 // pred_fallthru
        _
      // Predicated region
      $region21: #{tpu_custom_call.1} parent=11 // pred_check
        %p214 = pneg %p104
      $region22: #{tpu_custom_call.1} parent=11 // pred_check_branch
        %216 = sbr.rel (%p214) target = $region24
      $region23: #{tpu_custom_call.1} parent=11 // pred_region
        _
      $region24: #{tpu_custom_call.1} parent=11 // pred_fallthru
        _
      // Predicated region
      $region25: #{tpu_custom_call.1} parent=11 // pred_check
        %p217 = pneg %p125
      $region26: #{tpu_custom_call.1} parent=11 // pred_check_branch
        %219 = sbr.rel (%p217) target = $region28
      $region27: #{tpu_custom_call.1} parent=11 // pred_region
        _
      $region28: #{tpu_custom_call.1} parent=11 // pred_fallthru
        _
      // Predicated region
      $region29: #{tpu_custom_call.1} parent=11 // pred_check
        %p220 = pneg %p146
      $region30: #{tpu_custom_call.1} parent=11 // pred_check_branch
        %222 = sbr.rel (%p220) target = $region32
      $region31: #{tpu_custom_call.1} parent=11 // pred_region
        _
      $region32: #{tpu_custom_call.1} parent=11 // pred_fallthru
        _
      // Predicated region
      $region33: #{tpu_custom_call.1} parent=11 // pred_check
        %p223 = pneg %p167
      $region34: #{tpu_custom_call.1} parent=11 // pred_check_branch
        %225 = sbr.rel (%p223) target = $region36
      $region35: #{tpu_custom_call.1} parent=11 // pred_region
        _
      $region36: #{tpu_custom_call.1} parent=11 // pred_fallthru
        _
    $region12: #{tpu_custom_call.1} parent=5 // pred_fallthru
      _
    %p226 = scmp.lt.s32.totalorder %s15, 2
    // Predicated region
    $region37: #{tpu_custom_call.1} parent=5 // pred_check
      %p227 = pneg %p226
    $region38: #{tpu_custom_call.1} parent=5 // pred_check_branch
      %229 = sbr.rel (%p227) target = $region40
    $region39: #{tpu_custom_call.1} parent=5 // pred_region
      // Predicated region
      $region41: #{tpu_custom_call.1} parent=39 // pred_check
        %p230 = pneg %p35
      $region42: #{tpu_custom_call.1} parent=39 // pred_check_branch
        %232 = sbr.rel (%p230) target = $region44
      $region43: #{tpu_custom_call.1} parent=39 // pred_region
        %p233 = scmp.lt.s32.totalorder %s15, 1
        %s234 = scalar_select %p233, %s15, 1
        %s235 = smul.addr %s234, 2
        %s236 = smul.addr %s235, 8
        %s237 = scalar_lea.vmem %s0, %s236
      $region44: #{tpu_custom_call.1} parent=39 // pred_fallthru
        _
    $region40: #{tpu_custom_call.1} parent=5 // pred_fallthru
      _
    %p238 = scmp.le.s32.totalorder 1, %s15
    %p239 = scmp.lt.s32.totalorder %s15, 3
    %p240 = pnand %p238, %p239
    %p241 = pneg %p240
    // Predicated region
    $region45: #{tpu_custom_call.1} parent=5 // pred_check
      _
    $region46: #{tpu_custom_call.1} parent=5 // pred_check_branch
      %243 = sbr.rel (%p240) target = $region48
    $region47: #{tpu_custom_call.1} parent=5 // pred_region
      %s244 = ssub.s32 %s15, 1
      %p245 = scmp.lt.s32.totalorder %s20, 1
      %s246 = scalar_select %p245, %s20, 1
      %s247 = smul.addr %s246, 2
      %s248 = smul.addr %s247, 8
      %s249 = scalar_lea.vmem %s0, %s248
      %p250 = pneg %p41
      %p251 = pneg %p38
      %p252 = pneg %p62
      %p253 = pneg %p59
      %p254 = pneg %p83
      %p255 = pneg %p80
      %p256 = pneg %p104
      %p257 = pneg %p101
      %p258 = pneg %p125
      %p259 = pneg %p122
      %p260 = pneg %p146
      %p261 = pneg %p143
      %p262 = pneg %p167
      %p263 = pneg %p164
      %p264 = pneg %p193
      %p265 = pneg %p190
      %p266 = scmp.lt.s32.totalorder %s20, 1
      %s267 = scalar_select %p266, %s20, 1
      %s268 = smul.addr %s267, 2
      %s269 = smul.addr %s268, 8
      %s270 = scalar_lea.vmem %s7, %s269
      %p271 = scmp.lt.s32.totalorder %s20, 1
      %s272 = scalar_select %p271, %s20, 1
      %s273 = smul.addr %s272, 2
      %s274 = smul.addr %s273, 8
      %s275 = scalar_lea.vmem %s0, %s274
      %p276 = scmp.lt.s32.totalorder %s20, 1
      %s277 = scalar_select %p276, %s20, 1
      %s278 = smul.addr %s277, 2
      %s279 = smul.addr %s278, 8
      %s280 = scalar_lea.vmem %s7, %s279
      %v281 = vld [vmem:[%s275] sm:$0xff]
      %v282 = vld [vmem:[%s275 + $0x8] sm:$0xff]
      %v283 = vlaneseq
      %v284 = vshrl.u32 %v283, 7
      %v285 = vadd.s32 %v284, 8
      %vm286 = vcmp.ge.s32.totalorder %v284, 2
      %vm287 = vcmp.ge.s32.totalorder %v285, 2
      %vm288 = vcmp.ge.s32.totalorder %v284, 1
      %vm289 = vcmp.ge.s32.totalorder %v285, 1
      %vm290 = vcmp.lt.s32.totalorder %v284, 15
      %vm291 = vcmp.lt.s32.totalorder %v285, 15
      %vm292 = vcmp.lt.s32.totalorder %v284, 14
      %vm293 = vcmp.lt.s32.totalorder %v285, 14
      %v294 = vld [vmem:[%s5] sm:$0x1]
      %v295 = vld [vmem:[#allocation2] sm:$0x1]
      %v296 = vrot.slane %v281, 6
      %v297 = vrot.slane %v282, 6
      %vm298 = vcmp.lt.s32.totalorder %v284, 2
      %v299 = vsel %vm298, %v296, %v297
      %v300 = vsel %vm298, %v297, %v296
      %v301 = vsel %vm286, %v300, 0.0
      %v302 = vsel %vm287, %v299, 0.0
      %v303 = vrot.slane %v281, 7
      %v304 = vrot.slane %v282, 7
      %vm305 = vcmp.lt.s32.totalorder %v284, 1
      %v306 = vsel %vm305, %v303, %v304
      %v307 = vsel %vm305, %v304, %v303
      %v308 = vsel %vm288, %v307, 0.0
      %v309 = vsel %vm289, %v306, 0.0
      %v310 = vrot.slane %v281, 1
      %v311 = vrot.slane %v282, 1
      %vm312 = vcmp.lt.s32.totalorder %v284, 7
      %v313 = vsel %vm312, %v310, %v311
      %v314 = vsel %vm312, %v311, %v310
      %v315 = vsel %vm290, %v313, 0.0
      %v316 = vsel %vm291, %v314, 0.0
      %v317 = vrot.slane %v281, 2
      %v318 = vrot.slane %v282, 2
      %vm319 = vcmp.lt.s32.totalorder %v284, 6
      %v320 = vsel %vm319, %v317, %v318
      %v321 = vsel %vm319, %v318, %v317
      %v322 = vsel %vm292, %v320, 0.0
      %v323 = vsel %vm293, %v321, 0.0
      %326 = vrot.lane.b32.xlu0 %v308, 8
      %v327 = vpop.permute.xlu0 %326
      %328 = vrot.lane.b32.xlu0 %v309, 8
      %v329 = vpop.permute.xlu0 %328
      %334 = vrot.lane.b32.xlu0 %v281, 16
      %v335 = vpop.permute.xlu0 %334
      %336 = vrot.lane.b32.xlu0 %v282, 16
      %v337 = vpop.permute.xlu0 %336
      %342 = vrot.lane.b32.xlu0 %v315, 24
      %v343 = vpop.permute.xlu0 %342
      %344 = vrot.lane.b32.xlu0 %v316, 24
      %v345 = vpop.permute.xlu0 %344
      %350 = vrot.lane.b32.xlu0 %v322, 32
      %v351 = vpop.permute.xlu0 %350
      %352 = vrot.lane.b32.xlu0 %v323, 32
      %v353 = vpop.permute.xlu0 %352
      %vm356 = vcmask 64512
      %v357 = vsel %vm356, %v301, %v327
      %v358 = vsel %vm356, %v302, %v329
      %vm359 = vcmask 130048
      %v360 = vsel %vm359, %v357, %v335
      %v361 = vsel %vm359, %v358, %v337
      %vm362 = vcmask 195584
      %v363 = vsel %vm362, %v360, %v343
      %v364 = vsel %vm362, %v361, %v345
      %vm365 = vcmask 261120
      %v366 = vsel %vm365, %v363, %v351
      %v367 = vsel %vm365, %v364, %v353
      %v368 = vld [vmem:[%s1] sm:$0xff]
      %v369 = vld [vmem:[%s1 + $0x8] sm:$0xff]
      %v370 = vld [vmem:[%s1 + $0x10] sm:$0xff]
      %v371 = vld [vmem:[%s1 + $0x18] sm:$0xff]
      %v372 = vld [vmem:[%s1 + $0x20] sm:$0xff]
      %v373 = vld [vmem:[%s2] sm:$0x1]
      %v375 = vlaneseq
      %v376 = vshrl.u32 %v375, 7
      %v377 = vsub.s32 0, %v376
      %v378 = vrot.slane %v373, %v377
      %vm380 = vcmask 326656
      %v382 = vsel %vm380, %v366, 0
      %v385 = vsel %vm380, %v367, 0
      %387 = vmatprep.subr.mxu0 0.0
      %388 = vmatpush1.msra.mxu0 0.0
      %389 = vmatprep.subr.mxu0 0.0
      %390 = vmatpush1.msra.mxu0 0.0
      %391 = vmatprep.subr.mxu0 0.0
      %392 = vmatpush1.msra.mxu0 0.0
      %393 = vmatprep.subr.mxu0 0.0
      %394 = vmatpush1.msra.mxu0 0.0
      %395 = vmatprep.subr.mxu0 0.0
      %396 = vmatpush1.msra.mxu0 0.0
      %397 = vmatprep.subr.mxu0 0.0
      %398 = vmatpush1.msra.mxu0 0.0
      %399 = vmatprep.subr.mxu0 0.0
      %400 = vmatpush1.msra.mxu0 0.0
      %401 = vmatprep.subr.mxu0 0.0
      %402 = vmatpush1.msra.mxu0 0.0
      %403 = vmatprep.subr.mxu0 0.0
      %404 = vmatpush1.msra.mxu0 0.0
      %405 = vmatprep.subr.mxu0 0.0
      %406 = vmatpush1.msra.mxu0 0.0
      %407 = vmatprep.subr.mxu0 0.0
      %408 = vmatpush1.msra.mxu0 0.0
      %409 = vmatprep.subr.mxu0 0.0
      %410 = vmatpush1.msra.mxu0 %v372
      %411 = vmatprep.subr.mxu0 0.0
      %412 = vmatpush1.msra.mxu0 %v371
      %413 = vmatprep.subr.mxu0 0.0
      %414 = vmatpush1.msra.mxu0 %v370
      %415 = vmatprep.subr.mxu0 0.0
      %416 = vmatpush1.msra.mxu0 %v369
      %417 = vmatprep.subr.mxu0 0.0
      %418 = vmatpush1.msra.mxu0 %v368
      %419 = vmatprep.subr.mxu0 0.0
      %420 = vmatpush2.msra.mxu0 0.0
      %421 = vmatprep.subr.mxu0 0.0
      %422 = vmatpush2.msra.mxu0 0.0
      %423 = vmatprep.subr.mxu0 0.0
      %424 = vmatpush2.msra.mxu0 0.0
      %425 = vmatprep.subr.mxu0 0.0
      %426 = vmatpush2.msra.mxu0 0.0
      %427 = vmatprep.subr.mxu0 0.0
      %428 = vmatpush2.msra.mxu0 0.0
      %429 = vmatprep.subr.mxu0 0.0
      %430 = vmatpush2.msra.mxu0 0.0
      %431 = vmatprep.subr.mxu0 0.0
      %432 = vmatpush2.msra.mxu0 0.0
      %433 = vmatprep.subr.mxu0 0.0
      %434 = vmatpush2.msra.mxu0 0.0
      %435 = vmatprep.subr.mxu0 0.0
      %436 = vmatpush2.msra.mxu0 0.0
      %437 = vmatprep.subr.mxu0 0.0
      %438 = vmatpush2.msra.mxu0 0.0
      %439 = vmatprep.subr.mxu0 0.0
      %440 = vmatpush2.msra.mxu0 0.0
      %441 = vmatprep.subr.mxu0 0.0
      %442 = vmatpush2.msra.mxu0 0.0
      %443 = vmatprep.subr.mxu0 0.0
      %444 = vmatpush2.msra.mxu0 0.0
      %445 = vmatprep.subr.mxu0 0.0
      %446 = vmatpush2.msra.mxu0 0.0
      %447 = vmatprep.subr.mxu0 0.0
      %448 = vmatpush2.msra.mxu0 0.0
      %449 = vmatprep.subr.mxu0 0.0
      %450 = vmatpush2.msra.mxu0 0.0
      %451 = vmatprep.mubr.f32.mxu0 0.0
      %452 = vmatmul.mubr.f32.gmra.mxu0 %v382
      %v453 = vpop.f32.mrf.mxu0
      %v454 = vadd.f32 %v378, %v453
      %v455 = vpop.f32.mrf.mxu0
      %456 = vmatprep.mubr.f32.mxu0 0.0
      %457 = vmatmul.mubr.f32.gmra.mxu0 %v385
      %v458 = vpop.f32.mrf.mxu0
      %v459 = vadd.f32 %v378, %v458
      %v460 = vpop.f32.mrf.mxu0
      %461 = vdwg.mxu0
      %v462 = vmax.f32 %v454, 0.0
      %v463 = vmax.f32 %v459, 0.0
      %v464 = vsel %vm356, %v462, 0.0
      %v465 = vsel %vm356, %v463, 0.0
      %v466 = vadd.f32 %v464, %v465
      %467 = vadd.xlane.f32.xlu0 %v466
      %v468 = vpop.xlane.xlu0 %467
      %v469 = vrot.slane %v468, 4
      %v470 = vadd.f32 %v468, %v469
      %v471 = vrot.slane %v470, 2
      %v472 = vadd.f32 %v470, %v471
      %v473 = vrot.slane %v472, 1
      %v474 = vadd.f32 %v472, %v473
      %s475 = vtos %v474
      %v476 = vstv %s475
      %v477 = vmul.f32 %v462, %v462
      %v478 = vmul.f32 %v463, %v463
      %v479 = vsel %vm356, %v477, 0.0
      %v480 = vsel %vm356, %v478, 0.0
      %v481 = vadd.f32 %v479, %v480
      %482 = vadd.xlane.f32.xlu0 %v481
      %v483 = vpop.xlane.xlu0 %482
      %v484 = vrot.slane %v483, 4
      %v485 = vadd.f32 %v483, %v484
      %v486 = vrot.slane %v485, 2
      %v487 = vadd.f32 %v485, %v486
      %v488 = vrot.slane %v487, 1
      %v489 = vadd.f32 %v487, %v488
      %s490 = vtos %v489
      %v491 = vstv %s490
      %v492 = vmul.f32 %v476, 0.0078125
      %v493 = vmul.f32 %v491, 0.0078125
      %v494 = vmul.f32 %v492, %v492
      %v495 = vsub.f32 %v493, %v494
      %v496 = vmax.f32 %v495, 0.0
      %v497 = vsub.f32 %v462, %v492
      %v498 = vsub.f32 %v463, %v492
      %v499 = vadd.f32 %v496, 1e-05
      %v500 = vrsqrt.pop %v499
      %v501 = vmul.f32 %v497, %v500
      %v502 = vmul.f32 %v498, %v500
      %v503 = vld [vmem:[%s3] sm:$0xff]
      %v504 = vld [vmem:[%s3 + $0x8] sm:$0xff]
      %v505 = vmul.f32 %v501, %v503
      %v506 = vmul.f32 %v502, %v504
      %v507 = vld [vmem:[%s4] sm:$0xff]
      %v508 = vld [vmem:[%s4 + $0x8] sm:$0xff]
      %v509 = vadd.f32 %v505, %v507
      %v510 = vadd.f32 %v506, %v508
      %v511 = vadd.f32 %v509, %v281
      %v512 = vadd.f32 %v510, %v282
      %v513 = vrot.slane %v511, 6
      %v514 = vrot.slane %v512, 6
      %v515 = vsel %vm298, %v513, %v514
      %v516 = vsel %vm298, %v514, %v513
      %v517 = vsel %vm286, %v516, 0.0
      %v518 = vsel %vm287, %v515, 0.0
      %v519 = vrot.slane %v511, 7
      %v520 = vrot.slane %v512, 7
      %v521 = vsel %vm305, %v519, %v520
      %v522 = vsel %vm305, %v520, %v519
      %v523 = vsel %vm288, %v522, 0.0
      %v524 = vsel %vm289, %v521, 0.0
      %v525 = vrot.slane %v511, 1
      %v526 = vrot.slane %v512, 1
      %v527 = vsel %vm312, %v525, %v526
      %v528 = vsel %vm312, %v526, %v525
      %v529 = vsel %vm290, %v527, 0.0
      %v530 = vsel %vm291, %v528, 0.0
      %v531 = vrot.slane %v511, 2
      %v532 = vrot.slane %v512, 2
      %v533 = vsel %vm319, %v531, %v532
      %v534 = vsel %vm319, %v532, %v531
      %v535 = vsel %vm292, %v533, 0.0
      %v536 = vsel %vm293, %v534, 0.0
      %539 = vrot.lane.b32.xlu0 %v523, 8
      %v540 = vpop.permute.xlu0 %539
      %541 = vrot.lane.b32.xlu0 %v524, 8
      %v542 = vpop.permute.xlu0 %541
      %547 = vrot.lane.b32.xlu0 %v511, 16
      %v548 = vpop.permute.xlu0 %547
      %549 = vrot.lane.b32.xlu0 %v512, 16
      %v550 = vpop.permute.xlu0 %549
      %555 = vrot.lane.b32.xlu0 %v529, 24
      %v556 = vpop.permute.xlu0 %555
      %557 = vrot.lane.b32.xlu0 %v530, 24
      %v558 = vpop.permute.xlu0 %557
      %563 = vrot.lane.b32.xlu0 %v535, 32
      %v564 = vpop.permute.xlu0 %563
      %565 = vrot.lane.b32.xlu0 %v536, 32
      %v566 = vpop.permute.xlu0 %565
      %v569 = vsel %vm356, %v517, %v540
      %v570 = vsel %vm356, %v518, %v542
      %v571 = vsel %vm359, %v569, %v548
      %v572 = vsel %vm359, %v570, %v550
      %v573 = vsel %vm362, %v571, %v556
      %v574 = vsel %vm362, %v572, %v558
      %v575 = vsel %vm365, %v573, %v564
      %v576 = vsel %vm365, %v574, %v566
      %s577 = scalar_lea.vmem %s1, 40
      %v578 = vld [vmem:[%s577] sm:$0xff]
      %v579 = vld [vmem:[%s577 + $0x8] sm:$0xff]
      %v580 = vld [vmem:[%s577 + $0x10] sm:$0xff]
      %v581 = vld [vmem:[%s577 + $0x18] sm:$0xff]
      %v582 = vld [vmem:[%s577 + $0x20] sm:$0xff]
      %s583 = scalar_lea.vmem %s2, 1
      %v584 = vld [vmem:[%s583] sm:$0x1]
      %v586 = vlaneseq
      %v587 = vshrl.u32 %v586, 7
      %v588 = vsub.s32 0, %v587
      %v589 = vrot.slane %v584, %v588
      %v592 = vsel %vm380, %v575, 0
      %v595 = vsel %vm380, %v576, 0
      %597 = vmatprep.subr.mxu0 0.0
      %598 = vmatpush1.msra.mxu0 0.0
      %599 = vmatprep.subr.mxu0 0.0
      %600 = vmatpush1.msra.mxu0 0.0
      %601 = vmatprep.subr.mxu0 0.0
      %602 = vmatpush1.msra.mxu0 0.0
      %603 = vmatprep.subr.mxu0 0.0
      %604 = vmatpush1.msra.mxu0 0.0
      %605 = vmatprep.subr.mxu0 0.0
      %606 = vmatpush1.msra.mxu0 0.0
      %607 = vmatprep.subr.mxu0 0.0
      %608 = vmatpush1.msra.mxu0 0.0
      %609 = vmatprep.subr.mxu0 0.0
      %610 = vmatpush1.msra.mxu0 0.0
      %611 = vmatprep.subr.mxu0 0.0
      %612 = vmatpush1.msra.mxu0 0.0
      %613 = vmatprep.subr.mxu0 0.0
      %614 = vmatpush1.msra.mxu0 0.0
      %615 = vmatprep.subr.mxu0 0.0
      %616 = vmatpush1.msra.mxu0 0.0
      %617 = vmatprep.subr.mxu0 0.0
      %618 = vmatpush1.msra.mxu0 0.0
      %619 = vmatprep.subr.mxu0 0.0
      %620 = vmatpush1.msra.mxu0 %v582
      %621 = vmatprep.subr.mxu0 0.0
      %622 = vmatpush1.msra.mxu0 %v581
      %623 = vmatprep.subr.mxu0 0.0
      %624 = vmatpush1.msra.mxu0 %v580
      %625 = vmatprep.subr.mxu0 0.0
      %626 = vmatpush1.msra.mxu0 %v579
      %627 = vmatprep.subr.mxu0 0.0
      %628 = vmatpush1.msra.mxu0 %v578
      %629 = vmatprep.subr.mxu0 0.0
      %630 = vmatpush2.msra.mxu0 0.0
      %631 = vmatprep.subr.mxu0 0.0
      %632 = vmatpush2.msra.mxu0 0.0
      %633 = vmatprep.subr.mxu0 0.0
      %634 = vmatpush2.msra.mxu0 0.0
      %635 = vmatprep.subr.mxu0 0.0
      %636 = vmatpush2.msra.mxu0 0.0
      %637 = vmatprep.subr.mxu0 0.0
      %638 = vmatpush2.msra.mxu0 0.0
      %639 = vmatprep.subr.mxu0 0.0
      %640 = vmatpush2.msra.mxu0 0.0
      %641 = vmatprep.subr.mxu0 0.0
      %642 = vmatpush2.msra.mxu0 0.0
      %643 = vmatprep.subr.mxu0 0.0
      %644 = vmatpush2.msra.mxu0 0.0
      %645 = vmatprep.subr.mxu0 0.0
      %646 = vmatpush2.msra.mxu0 0.0
      %647 = vmatprep.subr.mxu0 0.0
      %648 = vmatpush2.msra.mxu0 0.0
      %649 = vmatprep.subr.mxu0 0.0
      %650 = vmatpush2.msra.mxu0 0.0
      %651 = vmatprep.subr.mxu0 0.0
      %652 = vmatpush2.msra.mxu0 0.0
      %653 = vmatprep.subr.mxu0 0.0
      %654 = vmatpush2.msra.mxu0 0.0
      %655 = vmatprep.subr.mxu0 0.0
      %656 = vmatpush2.msra.mxu0 0.0
      %657 = vmatprep.subr.mxu0 0.0
      %658 = vmatpush2.msra.mxu0 0.0
      %659 = vmatprep.subr.mxu0 0.0
      %660 = vmatpush2.msra.mxu0 0.0
      %661 = vmatprep.mubr.f32.mxu0 0.0
      %662 = vmatmul.mubr.f32.gmra.mxu0 %v592
      %v663 = vpop.f32.mrf.mxu0
      %v664 = vadd.f32 %v589, %v663
      %v665 = vpop.f32.mrf.mxu0
      %666 = vmatprep.mubr.f32.mxu0 0.0
      %667 = vmatmul.mubr.f32.gmra.mxu0 %v595
      %v668 = vpop.f32.mrf.mxu0
      %v669 = vadd.f32 %v589, %v668
      %v670 = vpop.f32.mrf.mxu0
      %671 = vdwg.mxu0
      %v672 = vmax.f32 %v664, 0.0
      %v673 = vmax.f32 %v669, 0.0
      %v674 = vsel %vm356, %v672, 0.0
      %v675 = vsel %vm356, %v673, 0.0
      %v676 = vadd.f32 %v674, %v675
      %677 = vadd.xlane.f32.xlu0 %v676
      %v678 = vpop.xlane.xlu0 %677
      %v679 = vrot.slane %v678, 4
      %v680 = vadd.f32 %v678, %v679
      %v681 = vrot.slane %v680, 2
      %v682 = vadd.f32 %v680, %v681
      %v683 = vrot.slane %v682, 1
      %v684 = vadd.f32 %v682, %v683
      %s685 = vtos %v684
      %v686 = vstv %s685
      %v687 = vmul.f32 %v672, %v672
      %v688 = vmul.f32 %v673, %v673
      %v689 = vsel %vm356, %v687, 0.0
      %v690 = vsel %vm356, %v688, 0.0
      %v691 = vadd.f32 %v689, %v690
      %692 = vadd.xlane.f32.xlu0 %v691
      %v693 = vpop.xlane.xlu0 %692
      %v694 = vrot.slane %v693, 4
      %v695 = vadd.f32 %v693, %v694
      %v696 = vrot.slane %v695, 2
      %v697 = vadd.f32 %v695, %v696
      %v698 = vrot.slane %v697, 1
      %v699 = vadd.f32 %v697, %v698
      %s700 = vtos %v699
      %v701 = vstv %s700
      %v702 = vmul.f32 %v686, 0.0078125
      %v703 = vmul.f32 %v701, 0.0078125
      %v704 = vmul.f32 %v702, %v702
      %v705 = vsub.f32 %v703, %v704
      %v706 = vmax.f32 %v705, 0.0
      %v707 = vsub.f32 %v672, %v702
      %v708 = vsub.f32 %v673, %v702
      %v709 = vadd.f32 %v706, 1e-05
      %v710 = vrsqrt.pop %v709
      %v711 = vmul.f32 %v707, %v710
      %v712 = vmul.f32 %v708, %v710
      %s713 = scalar_lea.vmem %s3, 16
      %v714 = vld [vmem:[%s713] sm:$0xff]
      %v715 = vld [vmem:[%s713 + $0x8] sm:$0xff]
      %v716 = vmul.f32 %v711, %v714
      %v717 = vmul.f32 %v712, %v715
      %s718 = scalar_lea.vmem %s4, 16
      %v719 = vld [vmem:[%s718] sm:$0xff]
      %v720 = vld [vmem:[%s718 + $0x8] sm:$0xff]
      %v721 = vadd.f32 %v716, %v719
      %v722 = vadd.f32 %v717, %v720
      %v723 = vadd.f32 %v721, %v511
      %v724 = vadd.f32 %v722, %v512
      %v726 = vlaneseq
      %v727 = vshrl.u32 %v726, 7
      %v728 = vsub.s32 0, %v727
      %v729 = vrot.slane %v294, %v728
      %v731 = vmul.f32 %v723, %v729
      %v732 = vmul.f32 %v724, %v729
      %v733 = vsel %vm356, %v731, 0.0
      %734 = vadd.xlane.f32.xlu0 %v733
      %v735 = vpop.xlane.xlu0 %734
      %v736 = vsel %vm356, %v732, 0.0
      %737 = vadd.xlane.f32.xlu0 %v736
      %v738 = vpop.xlane.xlu0 %737
      %v740 = vlaneseq
      %v741 = vshrl.u32 %v740, 7
      %v742 = vsub.s32 0, %v741
      %v743 = vrot.slane %v295, %v742
      %v745 = vadd.f32 %v735, %v743
      %v746 = vadd.f32 %v738, %v743
      %vm747 = vcmask 7168
      %748 = vst.msk [vmem:[%s280] sm:$0xff] %vm747, %v745
      %749 = vst.msk [vmem:[%s280 + $0x8] sm:$0xff] %vm747, %v746
      %p750 = scmp.lt.s32.totalorder %s20, 1
      %s751 = scalar_select %p750, %s20, 1
      %s752 = smul.addr %s751, 2
      %s753 = smul.addr %s752, 8
      %s754 = scalar_lea.vmem %s7, %s753
      // Predicated region
      $region49: #{tpu_custom_call.1} parent=47 // pred_check
        %p755 = pneg %p190
      $region50: #{tpu_custom_call.1} parent=47 // pred_check_branch
        %757 = sbr.rel (%p755) target = $region52
      $region51: #{tpu_custom_call.1} parent=47 // pred_region
        _
      $region52: #{tpu_custom_call.1} parent=47 // pred_fallthru
        _
    $region48: #{tpu_custom_call.1} parent=5 // pred_fallthru
      _
    %p758 = scmp.le.s32.totalorder 2, %s15
    // Predicated region
    $region53: #{tpu_custom_call.1} parent=5 // pred_check
      %p759 = pneg %p758
    $region54: #{tpu_custom_call.1} parent=5 // pred_check_branch
      %761 = sbr.rel (%p759) target = $region56
    $region55: #{tpu_custom_call.1} parent=5 // pred_region
      %s762 = ssub.s32 %s15, 2
      // Predicated region
      $region57: #{tpu_custom_call.1} parent=55 // pred_check
        %p763 = pneg %p196
      $region58: #{tpu_custom_call.1} parent=55 // pred_check_branch
        %765 = sbr.rel (%p763) target = $region60
      $region59: #{tpu_custom_call.1} parent=55 // pred_region
        %p766 = scmp.lt.s32.totalorder %s21, 1
        %s767 = scalar_select %p766, %s21, 1
        %s768 = smul.addr %s767, 2
        %s769 = smul.addr %s768, 8
        %s770 = scalar_lea.vmem %s7, %s769
      $region60: #{tpu_custom_call.1} parent=55 // pred_fallthru
        _
    $region56: #{tpu_custom_call.1} parent=5 // pred_fallthru
      _
  $region6: #{tpu_custom_call.1} parent=0 // loop_footer
    %s19 = sadd.s32 1, %s15
  $region7: #{tpu_custom_call.1} parent=0 // loop_footer_branch
    %14 = sbr.rel target = $region3
  $region8: #{tpu_custom_call.1} parent=0 // loop_exit
    _

</llo_original>
